<compile_context>
chip_gen: v6e
topology: v6e:2x2x1
jax: 0.10.0
libtpu: 0.0.40
codegen_flags: <defaults>
</compile_context>

<pallas_src>
import functools

import jax
import jax.numpy as jnp
from jax import lax
from jax.experimental import pallas as pl
from jax.experimental.pallas import tpu as pltpu

_LANE = 128
_DENSE_MAX_N_PAD = 1024   # dense single-tile path up to here; gridded beyond
_GRID_BLOCK_I = 512       # lane (sample) block of the gridded path
_GRID_BLOCK_J = 256       # sublane (risk-member) block of the gridded path


# ---------------------------------------------------------------------------
# Dense single-tile path (small / typical federated cohorts).
# ---------------------------------------------------------------------------
def _cox_dense_kernel(cols_ref, rows_ref, out_ref, *, inv_n):
    """Cox loss on one dense (N, N) risk-set tile.

    Layout: j ("risk-set member") runs along sublanes, i ("sample") along lanes.
      cols_ref : (2, N, 1)  [0] = s_j, [1] = t_j columns
      rows_ref : (8, N)     sublane 0 = s_i, 1 = t_i, 2 = e_i (rest zero padding)
      out_ref  : (1, 1)     mean Cox loss
    """
    neg_inf = jnp.float32(-jnp.inf)
    s_j = cols_ref[0]                      # (N, 1)
    t_j = cols_ref[1]                      # (N, 1)
    s_i = rows_ref[0:1, :]                 # (1, N)
    t_i = rows_ref[1:2, :]                 # (1, N)
    e_i = rows_ref[2:3, :]                 # (1, N)
    n_pad = s_j.shape[0]

    j_idx = lax.broadcasted_iota(jnp.int32, (n_pad, 1), 0)
    i_idx = lax.broadcasted_iota(jnp.int32, (1, n_pad), 1)

    # Risk set (equivalent to the stable descending-time sort). Padded rows carry
    # T = -inf so they never enter a real column's risk set; padded columns carry
    # E = 0 so their (finite) loss is zeroed in the epilogue.
    in_risk = (t_j > t_i) | ((t_j == t_i) & (j_idx <= i_idx))

    # Pass 1: per-sample max over the risk set (sublane reduce -> lane-dense (1, N)).
    mx = jnp.max(jnp.where(in_risk, s_j, neg_inf), axis=0, keepdims=True)
    # Pass 2: mask folded into the exponent; all inputs are finite so no +/-inf or NaN
    # intermediates, and only one dense (N, N) f32 tile is live at a time.
    ssum = jnp.sum(jnp.exp(jnp.where(in_risk, s_j - mx, neg_inf)),
                   axis=0, keepdims=True)                        # (1, N)

    # Lane-dense epilogue: ssum >= 1 for every column (its max element contributes
    # exp(0)), so the log is always finite.
    loss_i = ((mx - s_i) + jnp.log(ssum)) * e_i                  # (1, N)
    out_ref[...] = jnp.sum(loss_i, axis=1, keepdims=True) * inv_n


# ---------------------------------------------------------------------------
# Gridded online-logsumexp path (large cohorts).
# ---------------------------------------------------------------------------
def _cox_grid_kernel(cols_ref, rows_ref, loss_ref, m_sc, s_sc):
    """One (block_j x block_i) tile of the risk matrix; online LSE over j blocks.

      cols_ref : (2, BJ, 1)  s_j / t_j column block (j = "arbitrary" grid axis 1)
      rows_ref : (8, BI)     s_i / t_i / e_i row block (i = "parallel" grid axis 0)
      loss_ref : (1, BI)     per-sample (unreduced) loss, written on the last j block
      m_sc     : (1, BI)     running per-sample max (VMEM scratch)
      s_sc     : (1, BI)     running per-sample sum of exp(s_j - m) (VMEM scratch)
    """
    ib = pl.program_id(0)
    jb = pl.program_id(1)
    block_j = cols_ref.shape[1]
    block_i = rows_ref.shape[1]
    neg_inf = jnp.float32(-jnp.inf)

    @pl.when(jb == 0)
    def _():
        m_sc[...] = jnp.full_like(m_sc, -jnp.inf)
        s_sc[...] = jnp.zeros_like(s_sc)

    s_j = cols_ref[0]                      # (BJ, 1)
    t_j = cols_ref[1]                      # (BJ, 1)
    s_i = rows_ref[0:1, :]                 # (1, BI)
    t_i = rows_ref[1:2, :]                 # (1, BI)

    j_idx = jb * block_j + lax.broadcasted_iota(jnp.int32, (block_j, 1), 0)
    i_idx = ib * block_i + lax.broadcasted_iota(jnp.int32, (1, block_i), 1)
    in_risk = (t_j > t_i) | ((t_j == t_i) & (j_idx <= i_idx))    # (BJ, BI)

    # Online running max.
    blk_max = jnp.max(jnp.where(in_risk, s_j, neg_inf), axis=0, keepdims=True)
    m_old = m_sc[...]
    m_new = jnp.maximum(m_old, blk_max)

    # Factored exponent: exp(s_j - m_new) = exp(s_j - b) * exp(b - m_new), with b the
    # (unmasked) block max, so the O(BJ*BI) inner work is select+add on the VALU and
    # only O(BJ + BI) EUP exps are issued per block. Assumes in-block score spreads
    # stay far below ~80 (Cox risk scores are O(1)), so exp(b - m_new) cannot overflow
    # while the masked sum underflows.
    b = jnp.max(s_j, axis=0, keepdims=True)                      # (1, 1)
    e_j = jnp.exp(s_j - b)                                       # (BJ, 1)
    masked_sum = jnp.sum(jnp.where(in_risk, e_j, jnp.float32(0.0)),
                         axis=0, keepdims=True)                  # (1, BI)

    # Guards only matter for columns whose risk set is still empty (both maxes -inf):
    # there the rescale factors would be exp(-inf - -inf) = NaN; the correct
    # contribution is 0.
    alpha = jnp.where(m_old > neg_inf, jnp.exp(m_old - m_new), jnp.float32(0.0))
    contrib = jnp.where(blk_max > neg_inf,
                        jnp.exp(b - m_new) * masked_sum, jnp.float32(0.0))
    s_sc[...] = alpha * s_sc[...] + contrib
    m_sc[...] = m_new

    @pl.when(jb == pl.num_programs(1) - 1)
    def _():
        e_i = rows_ref[2:3, :]
        # Real columns: s_sc >= ~1 (their own score is in the risk set). Padded columns
        # (T = -inf) saw every real row so the log is finite there too; E = 0 zeroes them.
        loss_ref[...] = ((m_sc[...] - s_i) + jnp.log(s_sc[...])) * e_i


# ---------------------------------------------------------------------------
# Wrapper.
# ---------------------------------------------------------------------------
@jax.jit
def cox_loss(scores, truth):
    """scores: (n, 1) float; truth: (n, 2) float with [:, 0] = E, [:, 1] = T."""
    scores = scores.astype(jnp.float32)
    truth = truth.astype(jnp.float32)
    n = scores.shape[0]
    assert n >= 1, "cox_loss requires at least one sample"

    # Bucket the padded size to powers of two (>= 128) so federated cohorts of
    # varying size trigger a bounded number of Mosaic compiles.
    n_pad = max(_LANE, pl.next_power_of_2(n))
    pad = n_pad - n

    s = scores[:, 0]
    e = truth[:, 0]
    t = truth[:, 1]
    ste = jnp.stack([s, t, e], axis=0)                           # (3, n)
    if pad:
        # Pad times with -inf (never enters any real risk set), scores/events with 0,
        # so no padding masks are needed in the N^2 inner loop (real times are finite).
        pad_cols = jnp.broadcast_to(
            jnp.array([[0.0], [-jnp.inf], [0.0]], dtype=jnp.float32), (3, pad))
        ste = jnp.concatenate([ste, pad_cols], axis=1)           # (3, n_pad)
    rows = jnp.pad(ste, ((0, 5), (0, 0)))                        # (8, n_pad) row pack
    cols = ste[:2, :, None]                                      # (2, n_pad, 1) col pack

    if n_pad <= _DENSE_MAX_N_PAD:
        # Single dense (n_pad, n_pad) risk tile. Working set (mask + one f32 tile +
        # lane-padded columns) stays well under the scoped-VMEM limit below on
        # v5e / v6e / v7x for n_pad <= 1024.
        out = pl.pallas_call(
            functools.partial(_cox_dense_kernel, inv_n=1.0 / n),
            out_shape=jax.ShapeDtypeStruct((1, 1), jnp.float32),
            in_specs=[
                pl.BlockSpec(memory_space=pltpu.MemorySpace.VMEM),   # cols (2, N, 1)
                pl.BlockSpec(memory_space=pltpu.MemorySpace.VMEM),   # rows (8, N)
            ],
            out_specs=pl.BlockSpec(memory_space=pltpu.MemorySpace.VMEM),
            compiler_params=pltpu.CompilerParams(vmem_limit_bytes=48 << 20),
        )(cols, rows)
        return out[0, 0]

    # Gridded flash-style online logsumexp: i blocks "parallel" (megacore on v7x),
    # j blocks "arbitrary" (reduction); VMEM stays O(block) instead of O(n_pad^2).
    block_i = _GRID_BLOCK_I
    block_j = _GRID_BLOCK_J
    loss_row = pl.pallas_call(
        _cox_grid_kernel,
        out_shape=jax.ShapeDtypeStruct((1, n_pad), jnp.float32),
        grid=(n_pad // block_i, n_pad // block_j),
        in_specs=[
            pl.BlockSpec((2, block_j, 1), lambda ib, jb: (0, jb, 0)),
            pl.BlockSpec((8, block_i), lambda ib, jb: (0, ib)),
        ],
        out_specs=pl.BlockSpec((1, block_i), lambda ib, jb: (0, ib)),
        scratch_shapes=[pltpu.VMEM((1, block_i), jnp.float32),
                        pltpu.VMEM((1, block_i), jnp.float32)],
        compiler_params=pltpu.CompilerParams(
            dimension_semantics=("parallel", "arbitrary")),
    )(cols, rows)
    return jnp.sum(loss_row) / n


def cox_loss_ref(scores, truth):
    """Pure-JAX reference mirroring the PyTorch loop (stable sort + per-row LSE)."""
    scores = scores.astype(jnp.float32)
    truth = truth.astype(jnp.float32)
    order = jnp.argsort(-truth[:, 1], stable=True)
    s = scores[:, 0][order]
    e = truth[:, 0][order]
    n = s.shape[0]
    i_idx = jnp.arange(n)[:, None]
    j_idx = jnp.arange(n)[None, :]
    mask = j_idx <= i_idx
    sj = jnp.broadcast_to(s[None, :], (n, n))
    mx = jnp.max(jnp.where(mask, sj, -jnp.inf), axis=1)
    ssum = jnp.sum(jnp.where(mask, jnp.exp(sj - mx[:, None]), 0.0), axis=1)
    loss = ((mx - s) + jnp.log(ssum)) * e
    return jnp.mean(loss)


if __name__ == "__main__":
    k1, k2, k3, k4, k5, k6 = jax.random.split(jax.random.PRNGKey(0), 6)

    # Small cohort (typical federated batch) -> dense single-tile path.
    n_small = 8
    scores = jax.random.normal(k1, (n_small, 1), dtype=jnp.float32)
    events = (jax.random.uniform(k2, (n_small,)) > 0.3).astype(jnp.float32)
    times = jax.random.uniform(k3, (n_small,), minval=0.1, maxval=10.0,
                               dtype=jnp.float32)
    times = times.at[4].set(times[2])   # tied times exercise the stable tie-break
    truth = jnp.stack([events, times], axis=1)

    out = cox_loss(scores, truth)
    jax.block_until_ready(out)
    ref = cox_loss_ref(scores, truth)
    assert jnp.allclose(out, ref, rtol=1e-5, atol=1e-6), (out, ref)

    # Larger cohort with many tied (integer) times -> padding + gridded online-LSE
    # path (n_pad = 2048 > _DENSE_MAX_N_PAD).
    n_big = 1300
    scores_b = jax.random.normal(k4, (n_big, 1), dtype=jnp.float32)
    events_b = (jax.random.uniform(k5, (n_big,)) > 0.3).astype(jnp.float32)
    times_b = jax.random.randint(k6, (n_big,), 0, 60).astype(jnp.float32)
    truth_b = jnp.stack([events_b, times_b], axis=1)

    out_b = cox_loss(scores_b, truth_b)
    jax.block_until_ready(out_b)
    ref_b = cox_loss_ref(scores_b, truth_b)
    assert jnp.allclose(out_b, ref_b, rtol=1e-4, atol=1e-4), (out_b, ref_b)

    print("KERNEL_OK")
</pallas_src>

<mosaic_0001>
module attributes {stable_mosaic.version = 11 : i64} {
  func.func @_cox_dense_kernel(%arg0: memref<2x128x1xf32, #tpu.memory_space<vmem>>, %arg1: memref<8x128xf32, #tpu.memory_space<vmem>>, %arg2: memref<1x1xf32, #tpu.memory_space<vmem>>) attributes {dimension_semantics = [], scalar_prefetch = 0 : i64, scratch_operands = 0 : i64, tpu.core_type = #tpu.core_type<tc>} {
    %c0 = arith.constant 0 : index
    %c0_0 = arith.constant 0 : index
    %c0_1 = arith.constant 0 : index
    %0 = vector.load %arg0[%c0, %c0_0, %c0_1] : memref<2x128x1xf32, #tpu.memory_space<vmem>>, vector<1x128x1xf32>
    %1 = vector.shape_cast %0 : vector<1x128x1xf32> to vector<128x1xf32>
    %c1 = arith.constant 1 : index
    %c0_2 = arith.constant 0 : index
    %c0_3 = arith.constant 0 : index
    %2 = vector.load %arg0[%c1, %c0_2, %c0_3] : memref<2x128x1xf32, #tpu.memory_space<vmem>>, vector<1x128x1xf32>
    %3 = vector.shape_cast %2 : vector<1x128x1xf32> to vector<128x1xf32>
    %c0_4 = arith.constant 0 : index
    %c0_5 = arith.constant 0 : index
    %4 = vector.load %arg1[%c0_4, %c0_5] : memref<8x128xf32, #tpu.memory_space<vmem>>, vector<1x128xf32>
    %c1_6 = arith.constant 1 : index
    %c0_7 = arith.constant 0 : index
    %5 = vector.load %arg1[%c1_6, %c0_7] : memref<8x128xf32, #tpu.memory_space<vmem>>, vector<1x128xf32>
    %c2 = arith.constant 2 : index
    %c0_8 = arith.constant 0 : index
    %6 = vector.load %arg1[%c2, %c0_8] : memref<8x128xf32, #tpu.memory_space<vmem>>, vector<1x128xf32>
    %7 = tpu.iota {dimensions = array<i32: 0>} : vector<128x1xi32>
    %8 = tpu.iota {dimensions = array<i32: 1>} : vector<1x128xi32>
    %9 = vector.broadcast %3 : vector<128x1xf32> to vector<128x128xf32>
    %10 = vector.broadcast %5 : vector<1x128xf32> to vector<128x128xf32>
    %11 = arith.cmpf ogt, %9, %10 : vector<128x128xf32>
    %12 = vector.broadcast %3 : vector<128x1xf32> to vector<128x128xf32>
    %13 = vector.broadcast %5 : vector<1x128xf32> to vector<128x128xf32>
    %14 = arith.cmpf oeq, %12, %13 : vector<128x128xf32>
    %15 = vector.broadcast %7 : vector<128x1xi32> to vector<128x128xi32>
    %16 = vector.broadcast %8 : vector<1x128xi32> to vector<128x128xi32>
    %17 = arith.cmpi sle, %15, %16 : vector<128x128xi32>
    %18 = arith.andi %14, %17 : vector<128x128xi1>
    %19 = arith.ori %11, %18 : vector<128x128xi1>
    %cst = arith.constant 0xFF800000 : f32
    %20 = vector.shape_cast %1 : vector<128x1xf32> to vector<128x1xf32>
    %21 = vector.broadcast %20 : vector<128x1xf32> to vector<128x128xf32>
    %22 = vector.broadcast %cst : f32 to vector<128x128xf32>
    %23 = arith.select %19, %21, %22 : vector<128x128xi1>, vector<128x128xf32>
    %cst_9 = arith.constant dense<0xFF800000> : vector<128xf32>
    %24 = vector.multi_reduction <maximumf>, %23, %cst_9 [0] : vector<128x128xf32> to vector<128xf32>
    %25 = vector.shape_cast %24 : vector<128xf32> to vector<1x128xf32>
    %26 = vector.broadcast %1 : vector<128x1xf32> to vector<128x128xf32>
    %27 = vector.broadcast %25 : vector<1x128xf32> to vector<128x128xf32>
    %28 = arith.subf %26, %27 : vector<128x128xf32>
    %cst_10 = arith.constant 0xFF800000 : f32
    %29 = vector.broadcast %cst_10 : f32 to vector<128x128xf32>
    %30 = arith.select %19, %28, %29 : vector<128x128xi1>, vector<128x128xf32>
    %31 = math.exp %30 : vector<128x128xf32>
    %cst_11 = arith.constant dense<0.000000e+00> : vector<128xf32>
    %32 = vector.multi_reduction <add>, %31, %cst_11 [0] : vector<128x128xf32> to vector<128xf32>
    %33 = vector.shape_cast %32 : vector<128xf32> to vector<1x128xf32>
    %34 = arith.subf %25, %4 : vector<1x128xf32>
    %35 = math.log %33 : vector<1x128xf32>
    %36 = arith.addf %34, %35 : vector<1x128xf32>
    %37 = arith.mulf %36, %6 : vector<1x128xf32>
    %cst_12 = arith.constant dense<0.000000e+00> : vector<1xf32>
    %38 = vector.multi_reduction <add>, %37, %cst_12 [1] : vector<1x128xf32> to vector<1xf32>
    %39 = vector.shape_cast %38 : vector<1xf32> to vector<1x1xf32>
    %cst_13 = arith.constant 1.250000e-01 : f32
    %40 = vector.broadcast %cst_13 : f32 to vector<1x1xf32>
    %41 = arith.mulf %39, %40 : vector<1x1xf32>
    %c0_14 = arith.constant 0 : index
    %c0_15 = arith.constant 0 : index
    %42 = vector.load %arg2[%c0_14, %c0_15] : memref<1x1xf32, #tpu.memory_space<vmem>>, vector<1x1xf32>
    tpu.vector_store %arg2[%c0_14, %c0_15], %41 {strides = array<i32>} : memref<1x1xf32, #tpu.memory_space<vmem>>, vector<1x1xf32>,
    return
  }
}

</mosaic_0001>

<llo_original>
// kernel: cox_loss.1
$region0: #{cox_loss.1}
  #allocation0 [shape = 'u32[]', space=smem, size = 0x4, offset = 0x4, fixed_abs, tag = 'smem constant byte address 0x4 - core index']
  #allocation1 [shape = 'u32[144,128]{1,0:T(1,128)}', space=vmem, size = 0x12000, scoped, tag = 'internal scratch']
  %s0 = inlined_call_operand.vmem [shape: f32[2,128,1], index: 0, kind: input, shape index: {}]
  %s1 = inlined_call_operand.vmem [shape: f32[8,128], index: 1, kind: input, shape index: {}]
  %s2 = inlined_call_operand.hbm [shape: f32[1,1], index: 2, kind: output, shape index: {}]
  %s3 = sld [smem:[#allocation0]]
  $region18: #{cox_loss.1} parent=0
    _
  %s5 = ssub.s32 1, %s3
  %s6 = scalar_select 0, %s5, %s3
  $region1: #{cox_loss.1} parent=0
    #allocation2 [shape = 'u8[512]{0}', space=vmem, size = 0x400, scoped, tag = 'output window, operand 0, single buffered']
    #allocation3 [shape = 's32[1]{0}', space=sflag, size = 0x4, scoped, tag = 'scoped memory for cox_loss.1']
    %7 = vsyncpa [#allocation3], 0
    // Predicated region
    $region2: #{cox_loss.1} parent=1 // pred_check
      _
    $region3: #{cox_loss.1} parent=1 // pred_check_branch
      %9 = sbr.rel (0) target = $region5
    $region4: #{cox_loss.1} parent=1 // pred_region
      _
    $region5: #{cox_loss.1} parent=1 // pred_fallthru
      _
    // Predicated region
    $region6: #{cox_loss.1} parent=1 // pred_check
      _
    $region7: #{cox_loss.1} parent=1 // pred_check_branch
      %11 = sbr.rel (0) target = $region9
    $region8: #{cox_loss.1} parent=1 // pred_region
      _
    $region9: #{cox_loss.1} parent=1 // pred_fallthru
      _
    %v12 = vld [vmem:[%s0] sm:$0xff]
    %v13 = vld [vmem:[%s0 + $0x8] sm:$0xff]
    %v14 = vld [vmem:[%s0 + $0x10] sm:$0xff]
    %v15 = vld [vmem:[%s0 + $0x18] sm:$0xff]
    %v16 = vld [vmem:[%s0 + $0x20] sm:$0xff]
    %v17 = vld [vmem:[%s0 + $0x28] sm:$0xff]
    %v18 = vld [vmem:[%s0 + $0x30] sm:$0xff]
    %v19 = vld [vmem:[%s0 + $0x38] sm:$0xff]
    %v20 = vld [vmem:[%s0 + $0x40] sm:$0xff]
    %v21 = vld [vmem:[%s0 + $0x48] sm:$0xff]
    %v22 = vld [vmem:[%s0 + $0x50] sm:$0xff]
    %v23 = vld [vmem:[%s0 + $0x58] sm:$0xff]
    %v24 = vld [vmem:[%s0 + $0x60] sm:$0xff]
    %v25 = vld [vmem:[%s0 + $0x68] sm:$0xff]
    %v26 = vld [vmem:[%s0 + $0x70] sm:$0xff]
    %v27 = vld [vmem:[%s0 + $0x78] sm:$0xff]
    %s28 = scalar_lea.vmem %s0, 128
    %v29 = vld [vmem:[%s28] sm:$0xff]
    %v30 = vld [vmem:[%s28 + $0x8] sm:$0xff]
    %v31 = vld [vmem:[%s28 + $0x10] sm:$0xff]
    %v32 = vld [vmem:[%s28 + $0x18] sm:$0xff]
    %v33 = vld [vmem:[%s28 + $0x20] sm:$0xff]
    %v34 = vld [vmem:[%s28 + $0x28] sm:$0xff]
    %v35 = vld [vmem:[%s28 + $0x30] sm:$0xff]
    %v36 = vld [vmem:[%s28 + $0x38] sm:$0xff]
    %v37 = vld [vmem:[%s28 + $0x40] sm:$0xff]
    %v38 = vld [vmem:[%s28 + $0x48] sm:$0xff]
    %v39 = vld [vmem:[%s28 + $0x50] sm:$0xff]
    %v40 = vld [vmem:[%s28 + $0x58] sm:$0xff]
    %v41 = vld [vmem:[%s28 + $0x60] sm:$0xff]
    %v42 = vld [vmem:[%s28 + $0x68] sm:$0xff]
    %v43 = vld [vmem:[%s28 + $0x70] sm:$0xff]
    %v44 = vld [vmem:[%s28 + $0x78] sm:$0xff]
    %v45 = vld [vmem:[%s1] sm:$0x1]
    %v46 = vld [vmem:[%s1 + $0x1] sm:$0x1]
    %v47 = vld [vmem:[%s1 + $0x2] sm:$0x1]
    %v48 = vlaneseq
    %v49 = vshrl.u32 %v48, 7
    %v50 = vadd.s32 %v49, 8
    %v51 = vadd.s32 %v49, 16
    %v52 = vadd.s32 %v49, 24
    %v53 = vadd.s32 %v49, 32
    %v54 = vadd.s32 %v49, 40
    %v55 = vadd.s32 %v49, 48
    %v56 = vadd.s32 %v49, 56
    %v57 = vadd.s32 %v49, 64
    %v58 = vadd.s32 %v49, 72
    %v59 = vadd.s32 %v49, 80
    %v60 = vadd.s32 %v49, 88
    %v61 = vadd.s32 %v49, 96
    %v62 = vadd.s32 %v49, 104
    %v63 = vadd.s32 %v49, 112
    %v64 = vadd.s32 %v49, 120
    %v65 = vlaneseq
    %v66 = vand.u32 %v65, 127
    %68 = vset.pattern.permute.xlu0 0
    %69 = vperm.xlu0 %68, %v29
    %v70 = vpop.permute.xlu0 %69
    %73 = vset.pattern.permute.xlu0 0
    %74 = vperm.xlu0 %73, %v30
    %v75 = vpop.permute.xlu0 %74
    %78 = vset.pattern.permute.xlu0 0
    %79 = vperm.xlu0 %78, %v31
    %v80 = vpop.permute.xlu0 %79
    %83 = vset.pattern.permute.xlu0 0
    %84 = vperm.xlu0 %83, %v32
    %v85 = vpop.permute.xlu0 %84
    %88 = vset.pattern.permute.xlu0 0
    %89 = vperm.xlu0 %88, %v33
    %v90 = vpop.permute.xlu0 %89
    %93 = vset.pattern.permute.xlu0 0
    %94 = vperm.xlu0 %93, %v34
    %v95 = vpop.permute.xlu0 %94
    %98 = vset.pattern.permute.xlu0 0
    %99 = vperm.xlu0 %98, %v35
    %v100 = vpop.permute.xlu0 %99
    %103 = vset.pattern.permute.xlu0 0
    %104 = vperm.xlu0 %103, %v36
    %v105 = vpop.permute.xlu0 %104
    %108 = vset.pattern.permute.xlu0 0
    %109 = vperm.xlu0 %108, %v37
    %v110 = vpop.permute.xlu0 %109
    %113 = vset.pattern.permute.xlu0 0
    %114 = vperm.xlu0 %113, %v38
    %v115 = vpop.permute.xlu0 %114
    %118 = vset.pattern.permute.xlu0 0
    %119 = vperm.xlu0 %118, %v39
    %v120 = vpop.permute.xlu0 %119
    %123 = vset.pattern.permute.xlu0 0
    %124 = vperm.xlu0 %123, %v40
    %v125 = vpop.permute.xlu0 %124
    %128 = vset.pattern.permute.xlu0 0
    %129 = vperm.xlu0 %128, %v41
    %v130 = vpop.permute.xlu0 %129
    %133 = vset.pattern.permute.xlu0 0
    %134 = vperm.xlu0 %133, %v42
    %v135 = vpop.permute.xlu0 %134
    %138 = vset.pattern.permute.xlu0 0
    %139 = vperm.xlu0 %138, %v43
    %v140 = vpop.permute.xlu0 %139
    %143 = vset.pattern.permute.xlu0 0
    %144 = vperm.xlu0 %143, %v44
    %v145 = vpop.permute.xlu0 %144
    %v147 = vlaneseq
    %v148 = vshrl.u32 %v147, 7
    %v149 = vsub.s32 0, %v148
    %v150 = vrot.slane %v46, %v149
    %vm151 = vcmp.gt.f32.partialorder %v70, %v150
    %vm152 = vcmp.gt.f32.partialorder %v75, %v150
    %vm153 = vcmp.gt.f32.partialorder %v80, %v150
    %vm154 = vcmp.gt.f32.partialorder %v85, %v150
    %vm155 = vcmp.gt.f32.partialorder %v90, %v150
    %vm156 = vcmp.gt.f32.partialorder %v95, %v150
    %vm157 = vcmp.gt.f32.partialorder %v100, %v150
    %vm158 = vcmp.gt.f32.partialorder %v105, %v150
    %vm159 = vcmp.gt.f32.partialorder %v110, %v150
    %vm160 = vcmp.gt.f32.partialorder %v115, %v150
    %vm161 = vcmp.gt.f32.partialorder %v120, %v150
    %vm162 = vcmp.gt.f32.partialorder %v125, %v150
    %vm163 = vcmp.gt.f32.partialorder %v130, %v150
    %vm164 = vcmp.gt.f32.partialorder %v135, %v150
    %vm165 = vcmp.gt.f32.partialorder %v140, %v150
    %vm166 = vcmp.gt.f32.partialorder %v145, %v150
    %vm167 = vcmp.eq.f32.partialorder %v70, %v150
    %vm168 = vcmp.eq.f32.partialorder %v75, %v150
    %vm169 = vcmp.eq.f32.partialorder %v80, %v150
    %vm170 = vcmp.eq.f32.partialorder %v85, %v150
    %vm171 = vcmp.eq.f32.partialorder %v90, %v150
    %vm172 = vcmp.eq.f32.partialorder %v95, %v150
    %vm173 = vcmp.eq.f32.partialorder %v100, %v150
    %vm174 = vcmp.eq.f32.partialorder %v105, %v150
    %vm175 = vcmp.eq.f32.partialorder %v110, %v150
    %vm176 = vcmp.eq.f32.partialorder %v115, %v150
    %vm177 = vcmp.eq.f32.partialorder %v120, %v150
    %vm178 = vcmp.eq.f32.partialorder %v125, %v150
    %vm179 = vcmp.eq.f32.partialorder %v130, %v150
    %vm180 = vcmp.eq.f32.partialorder %v135, %v150
    %vm181 = vcmp.eq.f32.partialorder %v140, %v150
    %vm182 = vcmp.eq.f32.partialorder %v145, %v150
    %vm183 = vcmp.le.s32.totalorder %v49, %v66
    %vm184 = vcmp.le.s32.totalorder %v50, %v66
    %vm185 = vcmp.le.s32.totalorder %v51, %v66
    %vm186 = vcmp.le.s32.totalorder %v52, %v66
    %vm187 = vcmp.le.s32.totalorder %v53, %v66
    %vm188 = vcmp.le.s32.totalorder %v54, %v66
    %vm189 = vcmp.le.s32.totalorder %v55, %v66
    %vm190 = vcmp.le.s32.totalorder %v56, %v66
    %vm191 = vcmp.le.s32.totalorder %v57, %v66
    %vm192 = vcmp.le.s32.totalorder %v58, %v66
    %vm193 = vcmp.le.s32.totalorder %v59, %v66
    %vm194 = vcmp.le.s32.totalorder %v60, %v66
    %vm195 = vcmp.le.s32.totalorder %v61, %v66
    %vm196 = vcmp.le.s32.totalorder %v62, %v66
    %vm197 = vcmp.le.s32.totalorder %v63, %v66
    %vm198 = vcmp.le.s32.totalorder %v64, %v66
    %vm199 = vmand %vm167, %vm183
    %vm200 = vmand %vm168, %vm184
    %vm201 = vmand %vm169, %vm185
    %vm202 = vmand %vm170, %vm186
    %vm203 = vmand %vm171, %vm187
    %vm204 = vmand %vm172, %vm188
    %vm205 = vmand %vm173, %vm189
    %vm206 = vmand %vm174, %vm190
    %vm207 = vmand %vm175, %vm191
    %vm208 = vmand %vm176, %vm192
    %vm209 = vmand %vm177, %vm193
    %vm210 = vmand %vm178, %vm194
    %vm211 = vmand %vm179, %vm195
    %vm212 = vmand %vm180, %vm196
    %vm213 = vmand %vm181, %vm197
    %vm214 = vmand %vm182, %vm198
    %vm215 = vmor %vm151, %vm199
    %vm216 = vmor %vm152, %vm200
    %vm217 = vmor %vm153, %vm201
    %vm218 = vmor %vm154, %vm202
    %vm219 = vmor %vm155, %vm203
    %vm220 = vmor %vm156, %vm204
    %vm221 = vmor %vm157, %vm205
    %vm222 = vmor %vm158, %vm206
    %vm223 = vmor %vm159, %vm207
    %vm224 = vmor %vm160, %vm208
    %vm225 = vmor %vm161, %vm209
    %vm226 = vmor %vm162, %vm210
    %vm227 = vmor %vm163, %vm211
    %vm228 = vmor %vm164, %vm212
    %vm229 = vmor %vm165, %vm213
    %vm230 = vmor %vm166, %vm214
    %232 = vset.pattern.permute.xlu0 0
    %233 = vperm.xlu0 %232, %v12
    %v234 = vpop.permute.xlu0 %233
    %237 = vset.pattern.permute.xlu0 0
    %238 = vperm.xlu0 %237, %v13
    %v239 = vpop.permute.xlu0 %238
    %242 = vset.pattern.permute.xlu0 0
    %243 = vperm.xlu0 %242, %v14
    %v244 = vpop.permute.xlu0 %243
    %247 = vset.pattern.permute.xlu0 0
    %248 = vperm.xlu0 %247, %v15
    %v249 = vpop.permute.xlu0 %248
    %252 = vset.pattern.permute.xlu0 0
    %253 = vperm.xlu0 %252, %v16
    %v254 = vpop.permute.xlu0 %253
    %257 = vset.pattern.permute.xlu0 0
    %258 = vperm.xlu0 %257, %v17
    %v259 = vpop.permute.xlu0 %258
    %262 = vset.pattern.permute.xlu0 0
    %263 = vperm.xlu0 %262, %v18
    %v264 = vpop.permute.xlu0 %263
    %267 = vset.pattern.permute.xlu0 0
    %268 = vperm.xlu0 %267, %v19
    %v269 = vpop.permute.xlu0 %268
    %272 = vset.pattern.permute.xlu0 0
    %273 = vperm.xlu0 %272, %v20
    %v274 = vpop.permute.xlu0 %273
    %277 = vset.pattern.permute.xlu0 0
    %278 = vperm.xlu0 %277, %v21
    %v279 = vpop.permute.xlu0 %278
    %282 = vset.pattern.permute.xlu0 0
    %283 = vperm.xlu0 %282, %v22
    %v284 = vpop.permute.xlu0 %283
    %287 = vset.pattern.permute.xlu0 0
    %288 = vperm.xlu0 %287, %v23
    %v289 = vpop.permute.xlu0 %288
    %292 = vset.pattern.permute.xlu0 0
    %293 = vperm.xlu0 %292, %v24
    %v294 = vpop.permute.xlu0 %293
    %297 = vset.pattern.permute.xlu0 0
    %298 = vperm.xlu0 %297, %v25
    %v299 = vpop.permute.xlu0 %298
    %302 = vset.pattern.permute.xlu0 0
    %303 = vperm.xlu0 %302, %v26
    %v304 = vpop.permute.xlu0 %303
    %307 = vset.pattern.permute.xlu0 0
    %308 = vperm.xlu0 %307, %v27
    %v309 = vpop.permute.xlu0 %308
    %v311 = vsel %vm215, %v234, -inf
    %v312 = vsel %vm216, %v239, -inf
    %v313 = vsel %vm217, %v244, -inf
    %v314 = vsel %vm218, %v249, -inf
    %v315 = vsel %vm219, %v254, -inf
    %v316 = vsel %vm220, %v259, -inf
    %v317 = vsel %vm221, %v264, -inf
    %v318 = vsel %vm222, %v269, -inf
    %v319 = vsel %vm223, %v274, -inf
    %v320 = vsel %vm224, %v279, -inf
    %v321 = vsel %vm225, %v284, -inf
    %v322 = vsel %vm226, %v289, -inf
    %v323 = vsel %vm227, %v294, -inf
    %v324 = vsel %vm228, %v299, -inf
    %v325 = vsel %vm229, %v304, -inf
    %v326 = vsel %vm230, %v309, -inf
    %v327 = vmax.f32 %v311, %v315
    %v328 = vmax.f32 %v312, %v316
    %v329 = vmax.f32 %v313, %v317
    %v330 = vmax.f32 %v314, %v318
    %v331 = vmax.f32 %v327, %v319
    %v332 = vmax.f32 %v328, %v320
    %v333 = vmax.f32 %v329, %v321
    %v334 = vmax.f32 %v330, %v322
    %v335 = vmax.f32 %v331, %v323
    %v336 = vmax.f32 %v332, %v324
    %v337 = vmax.f32 %v333, %v325
    %v338 = vmax.f32 %v334, %v326
    %v339 = vmax.f32 %v335, %v336
    %v340 = vmax.f32 %v337, %v338
    %v341 = vmax.f32 %v339, %v340
    %v342 = vrot.slane %v341, 4
    %v343 = vmax.f32 %v341, %v342
    %v344 = vrot.slane %v343, 2
    %v345 = vmax.f32 %v343, %v344
    %v346 = vrot.slane %v345, 1
    %v347 = vmax.f32 %v345, %v346
    %v348 = vsub.f32 %v234, %v347
    %v349 = vsub.f32 %v239, %v347
    %v350 = vsub.f32 %v244, %v347
    %v351 = vsub.f32 %v249, %v347
    %v352 = vsub.f32 %v254, %v347
    %v353 = vsub.f32 %v259, %v347
    %v354 = vsub.f32 %v264, %v347
    %v355 = vsub.f32 %v269, %v347
    %v356 = vsub.f32 %v274, %v347
    %v357 = vsub.f32 %v279, %v347
    %v358 = vsub.f32 %v284, %v347
    %v359 = vsub.f32 %v289, %v347
    %v360 = vsub.f32 %v294, %v347
    %v361 = vsub.f32 %v299, %v347
    %v362 = vsub.f32 %v304, %v347
    %v363 = vsub.f32 %v309, %v347
    %v364 = vsel %vm215, %v348, -inf
    %v365 = vsel %vm216, %v349, -inf
    %v366 = vsel %vm217, %v350, -inf
    %v367 = vsel %vm218, %v351, -inf
    %v368 = vsel %vm219, %v352, -inf
    %v369 = vsel %vm220, %v353, -inf
    %v370 = vsel %vm221, %v354, -inf
    %v371 = vsel %vm222, %v355, -inf
    %v372 = vsel %vm223, %v356, -inf
    %v373 = vsel %vm224, %v357, -inf
    %v374 = vsel %vm225, %v358, -inf
    %v375 = vsel %vm226, %v359, -inf
    %v376 = vsel %vm227, %v360, -inf
    %v377 = vsel %vm228, %v361, -inf
    %v378 = vsel %vm229, %v362, -inf
    %v379 = vsel %vm230, %v363, -inf
    %v380 = vmul.f32 %v364, 1.442695
    %v381 = vpow.pop %v380
    %v382 = vmul.f32 %v365, 1.442695
    %v383 = vpow.pop %v382
    %v384 = vmul.f32 %v366, 1.442695
    %v385 = vpow.pop %v384
    %v386 = vmul.f32 %v367, 1.442695
    %v387 = vpow.pop %v386
    %v388 = vmul.f32 %v368, 1.442695
    %v389 = vpow.pop %v388
    %v390 = vmul.f32 %v369, 1.442695
    %v391 = vpow.pop %v390
    %v392 = vmul.f32 %v370, 1.442695
    %v393 = vpow.pop %v392
    %v394 = vmul.f32 %v371, 1.442695
    %v395 = vpow.pop %v394
    %v396 = vmul.f32 %v372, 1.442695
    %v397 = vpow.pop %v396
    %v398 = vmul.f32 %v373, 1.442695
    %v399 = vpow.pop %v398
    %v400 = vmul.f32 %v374, 1.442695
    %v401 = vpow.pop %v400
    %v402 = vmul.f32 %v375, 1.442695
    %v403 = vpow.pop %v402
    %v404 = vmul.f32 %v376, 1.442695
    %v405 = vpow.pop %v404
    %v406 = vmul.f32 %v377, 1.442695
    %v407 = vpow.pop %v406
    %v408 = vmul.f32 %v378, 1.442695
    %v409 = vpow.pop %v408
    %v410 = vmul.f32 %v379, 1.442695
    %v411 = vpow.pop %v410
    %v412 = vadd.f32 %v381, %v383
    %v413 = vadd.f32 %v412, %v385
    %v414 = vadd.f32 %v413, %v387
    %v415 = vadd.f32 %v414, %v389
    %v416 = vadd.f32 %v415, %v391
    %v417 = vadd.f32 %v416, %v393
    %v418 = vadd.f32 %v417, %v395
    %v419 = vadd.f32 %v418, %v397
    %v420 = vadd.f32 %v419, %v399
    %v421 = vadd.f32 %v420, %v401
    %v422 = vadd.f32 %v421, %v403
    %v423 = vadd.f32 %v422, %v405
    %v424 = vadd.f32 %v423, %v407
    %v425 = vadd.f32 %v424, %v409
    %v426 = vadd.f32 %v425, %v411
    %v427 = vrot.slane %v426, 4
    %v428 = vadd.f32 %v426, %v427
    %v429 = vrot.slane %v428, 2
    %v430 = vadd.f32 %v428, %v429
    %v431 = vrot.slane %v430, 1
    %v432 = vadd.f32 %v430, %v431
    %v433 = vsub.f32 %v347, %v45
    %v434 = vlog2.pop %v432
    %v435 = vmul.f32 %v434, 0.6931472
    %v436 = vadd.f32 %v433, %v435
    %v437 = vmul.f32 %v436, %v47
    %vm438 = vcmask 1040384
    %v439 = vsel %vm438, %v437, 0.0
    %440 = vadd.xlane.f32.xlu0 %v439
    %v441 = vpop.xlane.xlu0 %440
    %v442 = vmul.f32 %v441, 0.125
    %vm443 = vcmask 0
    %444 = vst.msk [vmem:[#allocation2] sm:$0x1] %vm443, %v442
    // Predicated region
    $region10: #{cox_loss.1} parent=1 // pred_check
      _
    $region11: #{cox_loss.1} parent=1 // pred_check_branch
      %446 = sbr.rel (0) target = $region13
    $region12: #{cox_loss.1} parent=1 // pred_region
      %s448 = ssub.s32 16, 16
      %449 = vsyncadd [#allocation3], %s448
      %s451 = sshll.u32 [#allocation2], 4
      %s452 = int_to_ptr.vmem [resolvable:$true] %s451
      %454 = dma.vmem_to_hbm [thread:$0]  %s452, 16, %s2, [#allocation3]
    $region13: #{cox_loss.1} parent=1 // pred_fallthru
      _
    // Predicated region
    $region14: #{cox_loss.1} parent=1 // pred_check
      _
    $region15: #{cox_loss.1} parent=1 // pred_check_branch
      %456 = sbr.rel (0) target = $region17
    $region16: #{cox_loss.1} parent=1 // pred_region
      %457 = dma.done [#allocation3], 16
    $region17: #{cox_loss.1} parent=1 // pred_fallthru
      _
    %458 = vsyncpa [#allocation3], 1

</llo_original>
